<compile_context>
chip_gen: v7x
topology: tpu7x:2x2x1
jax: 0.10.0
libtpu: 0.0.40
codegen_flags: <defaults>
</compile_context>

<pallas_src>
import functools

import jax
import jax.numpy as jnp
from jax.experimental import pallas as pl
from jax.experimental.pallas import tpu as pltpu

LANE = 128
SUBLANE = 8


def _sublane_multiple(dtype):
    """Sublane packing multiple for a dtype: 8 (32-bit), 16 (16-bit), 32 (8-bit)."""
    itemsize = jnp.dtype(dtype).itemsize
    return SUBLANE * max(1, 4 // itemsize)


def _chip_parallel_config():
    """Returns (num_chunks, chunk-axis dimension semantics) for the current chip."""
    try:
        kind = jax.devices()[0].device_kind.lower()
    except Exception:  # pragma: no cover - defensive fallback
        return 1, pltpu.ARBITRARY
    if "v7" in kind:
        # v7x has 2 TensorCores per chip; CORE_PARALLEL actually shards the axis.
        return 2, pltpu.CORE_PARALLEL
    return 1, pltpu.ARBITRARY


def _bce_elementwise(x, y):
    """Elementwise BCE with torch-style -100 clamps (plain jnp; used for tails/ref)."""
    x = x.astype(jnp.float32)
    y = y.astype(jnp.float32)
    log_x = jnp.maximum(jnp.log(x), -100.0)
    log_1mx = jnp.maximum(jnp.log1p(-x), -100.0)
    # Folded form of -(y*log_x + (1-y)*log_1mx).
    return y * (log_1mx - log_x) - log_1mx


def _bce_sum_kernel(x_ref, y_ref, partial_ref, acc_ref, *,
                    rows, tile_rows, steps_per_chunk, apply_mask):
    """Accumulate elementwise BCE over a (tile_rows, 128) tile into an (8,128) acc."""
    c = pl.program_id(0)   # (core-)parallel chunk
    s = pl.program_id(1)   # serial step within chunk

    @pl.when(s == 0)
    def _():
        acc_ref[...] = jnp.zeros_like(acc_ref)

    x = x_ref[...].astype(jnp.float32)
    y = y_ref[...].astype(jnp.float32)

    # PyTorch nn.BCELoss: clamp(log(x), -100) and clamp(log1p(-x), -100).
    log_x = jnp.maximum(jnp.log(x), -100.0)
    log_1mx = jnp.maximum(jnp.log1p(-x), -100.0)
    # Folded BCE: -(y*log_x + (1-y)*log_1mx) == y*(log_1mx - log_x) - log_1mx.
    elem = y * (log_1mx - log_x) - log_1mx

    def accumulate(e):
        # VPU-only partial reduction into the persistent vreg-shaped accumulator.
        acc_ref[...] += e.reshape(tile_rows // SUBLANE, SUBLANE, LANE).sum(axis=0)

    if apply_mask:
        # Only the boundary tile (or a clamped fully-OOB step) needs masking;
        # interior tiles skip the iota/compare/where entirely.
        row0 = (c * steps_per_chunk + s) * tile_rows
        in_bounds = row0 + tile_rows <= rows

        @pl.when(in_bounds)
        def _():
            accumulate(elem)

        @pl.when(jnp.logical_not(in_bounds))
        def _():
            row_ids = row0 + jax.lax.broadcasted_iota(
                jnp.int32, (tile_rows, LANE), 0)
            accumulate(jnp.where(row_ids < rows, elem, 0.0))
    else:
        accumulate(elem)

    @pl.when(s == steps_per_chunk - 1)
    def _():
        partial_ref[...] = acc_ref[...]


def bce_loss_sum(output, labels, *, tile_rows=8192, num_chunks=None):
    """Equivalent of nn.BCELoss(reduction='sum')(output, labels)."""
    assert output.shape == labels.shape
    x = output.reshape(-1)
    y = labels.reshape(-1)
    n = x.shape[0]

    # Dtype-aware rounding so block shapes respect (8/16/32, 128) packing.
    row_mult = max(_sublane_multiple(x.dtype), _sublane_multiple(y.dtype))
    n_main = (n // (LANE * row_mult)) * (LANE * row_mult)

    total = jnp.zeros((), jnp.float32)

    if n_main > 0:
        rows = n_main // LANE
        x2 = x[:n_main].reshape(rows, LANE)
        y2 = y[:n_main].reshape(rows, LANE)

        itemsize = x2.dtype.itemsize + y2.dtype.itemsize
        # Cap tile so 2 inputs x 2 pipeline buffers <= ~16 MiB (safe on v7x VMEM).
        tile_cap = (16 << 20) // (2 * LANE * itemsize)
        t = min(tile_rows, tile_cap, rows)
        tile_rows_eff = max(row_mult, (t // row_mult) * row_mult)

        num_blocks = pl.cdiv(rows, tile_rows_eff)
        if num_chunks is None:
            num_chunks_req, chunk_sem = _chip_parallel_config()
        else:
            num_chunks_req, chunk_sem = int(num_chunks), pltpu.PARALLEL
        num_chunks_eff = max(1, min(num_chunks_req, num_blocks))
        if num_chunks_eff == 1:
            chunk_sem = pltpu.ARBITRARY
        steps_per_chunk = pl.cdiv(num_blocks, num_chunks_eff)

        # Masking only needed if the last tile is partial or clamped OOB steps exist.
        apply_mask = (rows % tile_rows_eff != 0) or (num_blocks % num_chunks_eff != 0)

        kernel = functools.partial(
            _bce_sum_kernel,
            rows=rows,
            tile_rows=tile_rows_eff,
            steps_per_chunk=steps_per_chunk,
            apply_mask=apply_mask,
        )

        def in_map(c, s):
            # Clamp fully-OOB steps onto the last real block; their contribution
            # is zeroed by the (gated) in-kernel row mask.
            return (jnp.minimum(c * steps_per_chunk + s, num_blocks - 1), 0)

        # Double-buffered input blocks + headroom, within the scoped VMEM default.
        block_bytes = tile_rows_eff * LANE * itemsize
        vmem_limit = int(min(max(2 * block_bytes + (4 << 20), 16 << 20), 32 << 20))

        out_bytes = num_chunks_eff * SUBLANE * LANE * 4
        cost = pl.CostEstimate(
            flops=int(8 * n_main),
            transcendentals=int(2 * n_main),
            bytes_accessed=int(n_main * itemsize + out_bytes),
        )

        partials = pl.pallas_call(
            kernel,
            out_shape=jax.ShapeDtypeStruct((num_chunks_eff * SUBLANE, LANE),
                                           jnp.float32),
            grid_spec=pltpu.PrefetchScalarGridSpec(
                num_scalar_prefetch=0,
                grid=(num_chunks_eff, steps_per_chunk),
                in_specs=[
                    pl.BlockSpec((tile_rows_eff, LANE), in_map),
                    pl.BlockSpec((tile_rows_eff, LANE), in_map),
                ],
                out_specs=pl.BlockSpec((SUBLANE, LANE), lambda c, s: (c, 0)),
                scratch_shapes=[pltpu.VMEM((SUBLANE, LANE), jnp.float32)],
            ),
            compiler_params=pltpu.CompilerParams(
                dimension_semantics=(chunk_sem, pltpu.ARBITRARY),
                vmem_limit_bytes=vmem_limit,
            ),
            cost_estimate=cost,
        )(x2, y2)

        # Single tiny cross-lane reduction of the per-chunk partial sums.
        total = total + jnp.sum(partials)

    # Ragged tail (< 128*row_mult elements): plain jnp, no host-side concat/copy.
    # TODO(synk): a fully copy-free ragged tail inside the kernel would need a
    # manual-DMA path; the tail here is tiny so plain jnp is fine.
    if n_main < n:
        total = total + jnp.sum(_bce_elementwise(x[n_main:], y[n_main:]))

    return total


class LSTMLoss:
    """Pallas equivalent of the PyTorch LSTMLoss module (BCELoss(reduction='sum'))."""

    def __call__(self, output, labels):
        return bce_loss_sum(output, labels)


def _reference_bce_sum(output, labels):
    return jnp.sum(_bce_elementwise(output.reshape(-1), labels.reshape(-1)))


if __name__ == "__main__":
    key = jax.random.PRNGKey(0)
    k1, k2, k3, k4 = jax.random.split(key, 4)
    loss_fn = LSTMLoss()

    # Case 1: lane-aligned f32 inputs (batch=2, channels=4, 16x16 "spatial" grid).
    shape = (2, 4, 16, 16)
    output = jax.nn.sigmoid(jax.random.normal(k1, shape, dtype=jnp.float32))
    labels = jax.random.bernoulli(k2, p=0.5, shape=shape).astype(jnp.float32)
    loss = jax.block_until_ready(loss_fn(output, labels))
    ref = _reference_bce_sum(output, labels)
    assert jnp.allclose(loss, ref, rtol=1e-5, atol=1e-3), (loss, ref)

    # Case 2: ragged size (numel % 128 != 0) exercising the copy-free tail path.
    shape2 = (2, 4, 15, 15)
    output2 = jax.nn.sigmoid(jax.random.normal(k3, shape2, dtype=jnp.float32))
    labels2 = jax.random.bernoulli(k4, p=0.5, shape=shape2).astype(jnp.float32)
    loss2 = jax.block_until_ready(loss_fn(output2, labels2))
    ref2 = _reference_bce_sum(output2, labels2)
    assert jnp.allclose(loss2, ref2, rtol=1e-5, atol=1e-3), (loss2, ref2)

    # Case 3: native bf16 inputs (halves HBM traffic; math still f32 in-kernel).
    output3 = output.astype(jnp.bfloat16)
    labels3 = labels.astype(jnp.bfloat16)
    loss3 = jax.block_until_ready(loss_fn(output3, labels3))
    ref3 = _reference_bce_sum(output3, labels3)
    assert jnp.allclose(loss3, ref3, rtol=1e-4, atol=1e-2), (loss3, ref3)

    print("KERNEL_OK")
</pallas_src>

<mosaic_0001>
module attributes {stable_mosaic.version = 11 : i64} {
  func.func @_bce_sum_kernel(%arg0: i32, %arg1: i32, %arg2: memref<16x128xf32, #tpu.memory_space<vmem>>, %arg3: memref<16x128xf32, #tpu.memory_space<vmem>>, %arg4: memref<8x128xf32, #tpu.memory_space<vmem>>, %arg5: memref<8x128xf32, #tpu.memory_space<vmem>>) attributes {dimension_semantics = [#tpu.dimension_semantics<arbitrary>, #tpu.dimension_semantics<arbitrary>], iteration_bounds = array<i64: 1, 1>, scalar_prefetch = 0 : i64, scratch_operands = 1 : i64, tpu.core_type = #tpu.core_type<tc>, window_params = [{transform_indices = @transform_0, window_bounds = array<i64: 16, 128>}, {transform_indices = @transform_1, window_bounds = array<i64: 16, 128>}, {transform_indices = @transform_2, window_bounds = array<i64: 8, 128>}]} {
    %c0_i32 = arith.constant 0 : i32
    %0 = arith.cmpi eq, %arg1, %c0_i32 : i32
    %1 = arith.extui %0 : i1 to i32
    %c0_i32_0 = arith.constant 0 : i32
    %2 = arith.cmpi ne, %1, %c0_i32_0 : i32
    scf.if %2 {
      %cst_13 = arith.constant 0.000000e+00 : f32
      %24 = vector.broadcast %cst_13 : f32 to vector<8x128xf32>
      %c0_14 = arith.constant 0 : index
      %c0_15 = arith.constant 0 : index
      %25 = vector.load %arg5[%c0_14, %c0_15] : memref<8x128xf32, #tpu.memory_space<vmem>>, vector<8x128xf32>
      tpu.vector_store %arg5[%c0_14, %c0_15], %24 {strides = array<i32>} : memref<8x128xf32, #tpu.memory_space<vmem>>, vector<8x128xf32>,
    } else {
    }
    %c0 = arith.constant 0 : index
    %c0_1 = arith.constant 0 : index
    %3 = vector.load %arg2[%c0, %c0_1] : memref<16x128xf32, #tpu.memory_space<vmem>>, vector<16x128xf32>
    %c0_2 = arith.constant 0 : index
    %c0_3 = arith.constant 0 : index
    %4 = vector.load %arg3[%c0_2, %c0_3] : memref<16x128xf32, #tpu.memory_space<vmem>>, vector<16x128xf32>
    %5 = math.log %3 : vector<16x128xf32>
    %cst = arith.constant -1.000000e+02 : f32
    %6 = vector.broadcast %cst : f32 to vector<16x128xf32>
    %7 = arith.maximumf %5, %6 : vector<16x128xf32>
    %cst_4 = arith.constant 0.000000e+00 : f32
    %8 = vector.broadcast %cst_4 : f32 to vector<16x128xf32>
    %9 = arith.subf %8, %3 : vector<16x128xf32>
    %10 = math.log1p %9 : vector<16x128xf32>
    %cst_5 = arith.constant -1.000000e+02 : f32
    %11 = vector.broadcast %cst_5 : f32 to vector<16x128xf32>
    %12 = arith.maximumf %10, %11 : vector<16x128xf32>
    %13 = arith.subf %12, %7 : vector<16x128xf32>
    %14 = arith.mulf %4, %13 : vector<16x128xf32>
    %15 = arith.subf %14, %12 : vector<16x128xf32>
    %c0_6 = arith.constant 0 : index
    %c0_7 = arith.constant 0 : index
    %16 = vector.load %arg5[%c0_6, %c0_7] : memref<8x128xf32, #tpu.memory_space<vmem>>, vector<8x128xf32>
    %17 = vector.shape_cast %15 : vector<16x128xf32> to vector<2x8x128xf32>
    %cst_8 = arith.constant dense<0.000000e+00> : vector<8x128xf32>
    %18 = vector.multi_reduction <add>, %17, %cst_8 [0] : vector<2x8x128xf32> to vector<8x128xf32>
    %19 = arith.addf %16, %18 : vector<8x128xf32>
    %c0_9 = arith.constant 0 : index
    %c0_10 = arith.constant 0 : index
    %20 = vector.load %arg5[%c0_9, %c0_10] : memref<8x128xf32, #tpu.memory_space<vmem>>, vector<8x128xf32>
    tpu.vector_store %arg5[%c0_9, %c0_10], %19 {strides = array<i32>} : memref<8x128xf32, #tpu.memory_space<vmem>>, vector<8x128xf32>,
    %c0_i32_11 = arith.constant 0 : i32
    %21 = arith.cmpi eq, %arg1, %c0_i32_11 : i32
    %22 = arith.extui %21 : i1 to i32
    %c0_i32_12 = arith.constant 0 : i32
    %23 = arith.cmpi ne, %22, %c0_i32_12 : i32
    scf.if %23 {
      %c0_13 = arith.constant 0 : index
      %c0_14 = arith.constant 0 : index
      %24 = vector.load %arg5[%c0_13, %c0_14] : memref<8x128xf32, #tpu.memory_space<vmem>>, vector<8x128xf32>
      %c0_15 = arith.constant 0 : index
      %c0_16 = arith.constant 0 : index
      %25 = vector.load %arg4[%c0_15, %c0_16] : memref<8x128xf32, #tpu.memory_space<vmem>>, vector<8x128xf32>
      tpu.vector_store %arg4[%c0_15, %c0_16], %24 {strides = array<i32>} : memref<8x128xf32, #tpu.memory_space<vmem>>, vector<8x128xf32>,
    } else {
    }
    return
  }
  func.func @transform_0(%arg0: i32, %arg1: i32) -> (i32, i32) {
    %c1_i32 = arith.constant 1 : i32
    %0 = arith.muli %arg0, %c1_i32 : i32
    %1 = arith.addi %0, %arg1 : i32
    %c0_i32 = arith.constant 0 : i32
    %2 = arith.minsi %1, %c0_i32 : i32
    %c0_i32_0 = arith.constant 0 : i32
    %c0_i32_1 = arith.constant 0 : i32
    return %2, %c0_i32_0 : i32, i32
  }
  func.func @transform_1(%arg0: i32, %arg1: i32) -> (i32, i32) {
    %c1_i32 = arith.constant 1 : i32
    %0 = arith.muli %arg0, %c1_i32 : i32
    %1 = arith.addi %0, %arg1 : i32
    %c0_i32 = arith.constant 0 : i32
    %2 = arith.minsi %1, %c0_i32 : i32
    %c0_i32_0 = arith.constant 0 : i32
    %c0_i32_1 = arith.constant 0 : i32
    return %2, %c0_i32_0 : i32, i32
  }
  func.func @transform_2(%arg0: i32, %arg1: i32) -> (i32, i32) {
    %c0_i32 = arith.constant 0 : i32
    %c0_i32_0 = arith.constant 0 : i32
    return %arg0, %c0_i32 : i32, i32
  }
}

</mosaic_0001>

<llo_original>
// kernel: tpu_custom_call.1
$region0: #{tpu_custom_call.1}
  #allocation0 [shape = 'u32[]', space=smem, size = 0x4, offset = 0x4, fixed_abs, tag = 'smem constant byte address 0x4 - core index']
  #allocation1 [shape = 'u32[144,128]{1,0:T(1,128)}', space=vmem, size = 0x12000, scoped, tag = 'internal scratch']
  #allocation2 [shape = 'f32[8,128]{1,0:T(8,128)}', space=vmem, size = 0x1000, scoped, tag = 'scratch operand']
  %s0 = inlined_call_operand.hbm [shape: f32[16,128], index: 0, kind: input, shape index: {}]
  %s1 = inlined_call_operand.hbm [shape: f32[16,128], index: 1, kind: input, shape index: {}]
  %s2 = inlined_call_operand.hbm [shape: f32[8,128], index: 2, kind: output, shape index: {}]
  %s3 = sld [smem:[#allocation0]]
  $region34: #{tpu_custom_call.1} parent=0
    _
  %s5 = ssub.s32 1, %s3
  %s6 = scalar_select 0, %s5, %s3
  $region1: #{tpu_custom_call.1} parent=0
    #allocation3 [shape = 'u8[8192]{0}', space=vmem, size = 0x2000, scoped, tag = 'input window, operand 0, single buffered']
    #allocation4 [shape = 's32[1]{0}', space=sflag, size = 0x4, scoped, tag = 'scoped memory for tpu_custom_call.1']
    #allocation5 [shape = 's32[1]{0}', space=sflag, size = 0x4, scoped, tag = 'scoped memory for tpu_custom_call.1']
    #allocation6 [shape = 'u8[8192]{0}', space=vmem, size = 0x2000, scoped, tag = 'input window, operand 1, single buffered']
    #allocation7 [shape = 's32[1]{0}', space=sflag, size = 0x4, scoped, tag = 'scoped memory for tpu_custom_call.1']
    #allocation8 [shape = 'u8[4096]{0}', space=vmem, size = 0x1000, scoped, tag = 'output window, operand 0, single buffered']
    %7 = vsyncpa [#allocation4], 0
    %8 = vsyncpa [#allocation7], 0
    %9 = vsyncpa [#allocation5], 0
    // Predicated region
    $region2: #{tpu_custom_call.1} parent=1 // pred_check
      _
    $region3: #{tpu_custom_call.1} parent=1 // pred_check_branch
      %11 = sbr.rel (0) target = $region5
    $region4: #{tpu_custom_call.1} parent=1 // pred_region
      %s12 = sadd.s32 0, 0
      %p13 = scmp.lt.s32.totalorder %s12, 0
      %s14 = scalar_select %p13, %s12, 0
      %s15 = smul.u32 2, %s14
      %s17 = ssub.s32 256, 256
      %18 = vsyncadd [#allocation4], %s17
      %s19 = smul.addr %s15, 128
      %s20 = scalar_lea.hbm %s0, %s19
      %s21 = sshll.u32 [#allocation3], 4
      %s22 = int_to_ptr.vmem [resolvable:$true] %s21
      %27 = dma.hbm_to_vmem [thread:$0]  %s20, 256, %s22, [#allocation4], 128, 128, 8
    $region5: #{tpu_custom_call.1} parent=1 // pred_fallthru
      _
    // Predicated region
    $region6: #{tpu_custom_call.1} parent=1 // pred_check
      _
    $region7: #{tpu_custom_call.1} parent=1 // pred_check_branch
      %29 = sbr.rel (0) target = $region9
    $region8: #{tpu_custom_call.1} parent=1 // pred_region
      %s30 = sadd.s32 0, 0
      %p31 = scmp.lt.s32.totalorder %s30, 0
      %s32 = scalar_select %p31, %s30, 0
      %s33 = smul.u32 2, %s32
      %s35 = ssub.s32 256, 256
      %36 = vsyncadd [#allocation7], %s35
      %s37 = smul.addr %s33, 128
      %s38 = scalar_lea.hbm %s1, %s37
      %s39 = sshll.u32 [#allocation6], 4
      %s40 = int_to_ptr.vmem [resolvable:$true] %s39
      %45 = dma.hbm_to_vmem [thread:$0]  %s38, 256, %s40, [#allocation7], 128, 128, 8
    $region9: #{tpu_custom_call.1} parent=1 // pred_fallthru
      _
    // Predicated region
    $region10: #{tpu_custom_call.1} parent=1 // pred_check
      _
    $region11: #{tpu_custom_call.1} parent=1 // pred_check_branch
      %47 = sbr.rel (0) target = $region13
    $region12: #{tpu_custom_call.1} parent=1 // pred_region
      %48 = dma.done [#allocation4], 256
    $region13: #{tpu_custom_call.1} parent=1 // pred_fallthru
      _
    // Predicated region
    $region14: #{tpu_custom_call.1} parent=1 // pred_check
      _
    $region15: #{tpu_custom_call.1} parent=1 // pred_check_branch
      %50 = sbr.rel (0) target = $region17
    $region16: #{tpu_custom_call.1} parent=1 // pred_region
      %51 = dma.done [#allocation7], 256
    $region17: #{tpu_custom_call.1} parent=1 // pred_fallthru
      _
    %s52 = sadd.s32 0, 0
    %p53 = scmp.lt.s32.totalorder %s52, 0
    %s54 = scalar_select %p53, %s52, 0
    %s55 = smul.u32 2, %s54
    %s56 = sadd.s32 0, 0
    %p57 = scmp.lt.s32.totalorder %s56, 0
    %s58 = scalar_select %p57, %s56, 0
    %s59 = smul.u32 2, %s58
    %p60 = scmp.eq.s32.totalorder 0, 0
    // Predicated region
    $region18: #{tpu_custom_call.1} parent=1 // pred_check
      %p61 = pneg %p60
    $region19: #{tpu_custom_call.1} parent=1 // pred_check_branch
      %63 = sbr.rel (%p61) target = $region21
    $region20: #{tpu_custom_call.1} parent=1 // pred_region
      %64 = vst [vmem:[#allocation2] sm:$0xff] 0.0
    $region21: #{tpu_custom_call.1} parent=1 // pred_fallthru
      _
    %v65 = vld [vmem:[#allocation3] sm:$0xff]
    %v66 = vld [vmem:[#allocation3 + $0x8] sm:$0xff]
    %v67 = vld [vmem:[#allocation6] sm:$0xff]
    %v68 = vld [vmem:[#allocation6 + $0x8] sm:$0xff]
    %v69 = vlog2.pop %v65
    %v70 = vmul.f32 %v69, 0.6931472
    %v71 = vlog2.pop %v66
    %v72 = vmul.f32 %v71, 0.6931472
    %v73 = vmax.f32 %v70, -100.0
    %v74 = vmax.f32 %v72, -100.0
    %v75 = vsub.f32 0.0, %v65
    %v76 = vsub.f32 0.0, %v66
    %v77 = vadd.f32 %v75, 1.0
    %v78 = vlog2.pop %v77
    %v79 = vmul.f32 %v78, 0.6931472
    %v80 = vmul.f32 -0.5, %v75
    %v81 = vadd.f32 %v80, 1.0
    %v82 = vmul.f32 %v81, %v75
    %v83 = vand.u32 2147483647, %v75
    %vm84 = vcmp.lt.f32.partialorder %v83, 0.0004427343
    %v85 = vsel %vm84, %v82, %v79
    %v86 = vadd.f32 %v76, 1.0
    %v87 = vlog2.pop %v86
    %v88 = vmul.f32 %v87, 0.6931472
    %v89 = vmul.f32 -0.5, %v76
    %v90 = vadd.f32 %v89, 1.0
    %v91 = vmul.f32 %v90, %v76
    %v92 = vand.u32 2147483647, %v76
    %vm93 = vcmp.lt.f32.partialorder %v92, 0.0004427343
    %v94 = vsel %vm93, %v91, %v88
    %v95 = vmax.f32 %v85, -100.0
    %v96 = vmax.f32 %v94, -100.0
    %v97 = vsub.f32 %v95, %v73
    %v98 = vsub.f32 %v96, %v74
    %v99 = vmul.f32 %v67, %v97
    %v100 = vmul.f32 %v68, %v98
    %v101 = vsub.f32 %v99, %v95
    %v102 = vsub.f32 %v100, %v96
    %v103 = vld [vmem:[#allocation2] sm:$0xff]
    %v104 = vadd.f32 %v101, %v102
    %v105 = vadd.f32 %v103, %v104
    %106 = vst [vmem:[#allocation2] sm:$0xff] %v105
    // Predicated region
    $region22: #{tpu_custom_call.1} parent=1 // pred_check
      %p107 = pneg %p60
    $region23: #{tpu_custom_call.1} parent=1 // pred_check_branch
      %109 = sbr.rel (%p107) target = $region25
    $region24: #{tpu_custom_call.1} parent=1 // pred_region
      %v110 = vld [vmem:[#allocation2] sm:$0xff]
      %111 = vst [vmem:[#allocation8] sm:$0xff] %v110
    $region25: #{tpu_custom_call.1} parent=1 // pred_fallthru
      _
    // Predicated region
    $region26: #{tpu_custom_call.1} parent=1 // pred_check
      _
    $region27: #{tpu_custom_call.1} parent=1 // pred_check_branch
      %113 = sbr.rel (0) target = $region29
    $region28: #{tpu_custom_call.1} parent=1 // pred_region
      %s115 = ssub.s32 128, 128
      %116 = vsyncadd [#allocation5], %s115
      %s118 = sshll.u32 [#allocation8], 4
      %s119 = int_to_ptr.vmem [resolvable:$true] %s118
      %121 = dma.vmem_to_hbm [thread:$0]  %s119, 128, %s2, [#allocation5]
    $region29: #{tpu_custom_call.1} parent=1 // pred_fallthru
      _
    // Predicated region
    $region30: #{tpu_custom_call.1} parent=1 // pred_check
      _
    $region31: #{tpu_custom_call.1} parent=1 // pred_check_branch
      %123 = sbr.rel (0) target = $region33
    $region32: #{tpu_custom_call.1} parent=1 // pred_region
      %124 = dma.done [#allocation5], 128
    $region33: #{tpu_custom_call.1} parent=1 // pred_fallthru
      _
    %125 = vsyncpa [#allocation4], 1
    %126 = vsyncpa [#allocation7], 1
    %127 = vsyncpa [#allocation5], 1

</llo_original>
